<compile_context>
chip_gen: v5e
topology: v5e:2x2
jax: 0.10.0
libtpu: 0.0.40
codegen_flags: <defaults>
</compile_context>

<pallas_src>
import jax
import jax.numpy as jnp
from jax.experimental import pallas as pl
from jax.experimental.pallas import tpu as pltpu


def _round_up(n, m):
    return ((n + m - 1) // m) * m


def mlp_kernel(x_ref,
               w1_ref, b1_ref,
               w2_ref, b2_ref,
               w3_ref, b3_ref,
               w4_ref, b4_ref,
               o_ref):
    # x_ref : (4, Bt) bf16, feature-major -> batch on the 128-lane axis.
    # wN_ref: (out, in) bf16; bN_ref: (out, 1) f32.  Each layer: y = W @ x + b.
    x = x_ref[...]  # bf16

    h = jnp.dot(w1_ref[...], x, preferred_element_type=jnp.float32) + b1_ref[...]
    h = jnp.maximum(h, 0.0).astype(jnp.bfloat16)

    h = jnp.dot(w2_ref[...], h, preferred_element_type=jnp.float32) + b2_ref[...]
    h = jnp.maximum(h, 0.0).astype(jnp.bfloat16)

    h = jnp.dot(w3_ref[...], h, preferred_element_type=jnp.float32) + b3_ref[...]
    h = jnp.maximum(h, 0.0).astype(jnp.bfloat16)

    y = jnp.dot(w4_ref[...], h, preferred_element_type=jnp.float32) + b4_ref[...]

    o_ref[...] = y.astype(o_ref.dtype)  # (2, Bt) f32 — lane-dense store


# Per-lane double-buffered VMEM cost ~ 2 * (4*2 B input + 2*4 B output) = 32 B/lane.
# 128K lanes -> ~4 MiB: fits v5e's 16 MiB scoped default and v7x's 32 MiB default easily.
_MAX_BATCH_TILE = 128 * 1024


def _choose_tiling(B, max_tile):
    """Pick (tile, padded_batch, grid_len): tile multiple of 128, padding <= ~tile rounding,
    and >=2 grid steps when the batch allows it (v7x megacore split)."""
    B128 = _round_up(max(B, 1), 128)
    min_steps = 2 if B128 >= 256 else 1
    steps = max(min_steps, -(-B128 // max_tile))
    Bt = _round_up(-(-B128 // steps), 128)
    grid_len = -(-B128 // Bt)
    Bp = Bt * grid_len
    return Bt, Bp, grid_len


def net_forward_feature_major(x_fm, params, *, max_batch_tile=_MAX_BATCH_TILE):
    """Preferred entry point: x_fm is (4, B) feature-major; returns (2, B) float32.

    No wrapper-side HBM transposes — use this when the surrounding model keeps
    activations feature-major end-to-end.
    """
    _, B = x_fm.shape
    Bt, Bp, grid_len = _choose_tiling(B, max_batch_tile)

    x_fm = x_fm.astype(jnp.bfloat16)
    if Bp != B:
        x_fm = jnp.pad(x_fm, ((0, 0), (0, Bp - B)))

    # Weights bf16 (single-pass MXU), biases f32 (added after f32 accumulation).
    w = [params[f"w{i}"].astype(jnp.bfloat16) for i in range(1, 5)]
    b = [params[f"b{i}"].astype(jnp.float32).reshape(-1, 1) for i in range(1, 5)]

    # Weights/biases: full-array blocks, constant block index -> stay VMEM-resident.
    resident = lambda a: pl.BlockSpec(a.shape, lambda i: (0,) * a.ndim)

    flops = 2 * (4 * 16 + 16 * 16 + 16 * 16 + 16 * 2) * Bp
    bytes_accessed = Bp * (4 * 2 + 2 * 4) + sum(
        int(a.size) * a.dtype.itemsize for a in (w + b))

    out_fm = pl.pallas_call(
        mlp_kernel,
        out_shape=jax.ShapeDtypeStruct((2, Bp), jnp.float32),
        grid=(grid_len,),
        in_specs=[
            pl.BlockSpec((4, Bt), lambda i: (0, i)),   # stream batch tiles, lane-dense
            resident(w[0]), resident(b[0]),
            resident(w[1]), resident(b[1]),
            resident(w[2]), resident(b[2]),
            resident(w[3]), resident(b[3]),
        ],
        out_specs=pl.BlockSpec((2, Bt), lambda i: (0, i)),
        compiler_params=pltpu.CompilerParams(
            dimension_semantics=("parallel",),          # megacore split on v7x
        ),
        cost_estimate=pl.CostEstimate(
            flops=flops, transcendentals=0, bytes_accessed=bytes_accessed),
    )(x_fm, w[0], b[0], w[1], b[1], w[2], b[2], w[3], b[3])

    return out_fm[:, :B]


def net_forward(x, params, *, max_batch_tile=_MAX_BATCH_TILE):
    """x: (B, 4) float32 (PyTorch layout). Returns (B, 2) float32."""
    # Cast before the transpose so the layout copy moves bf16 (8 B/sample), not f32.
    # TODO(synk): for full roofline, keep activations feature-major end-to-end
    # (net_forward_feature_major) or fold this transpose into the kernel via a
    # lane-dense (B/64, 128) reinterpretation + XLU deinterleave.
    x_fm = x.astype(jnp.bfloat16).T                     # (4, B)
    out_fm = net_forward_feature_major(x_fm, params, max_batch_tile=max_batch_tile)
    return out_fm.T                                      # (B, 2)


def init_params(key):
    """Deterministic synthetic init, PyTorch Linear layout: W (out, in), b (out,)."""
    sizes = [(4, 16), (16, 16), (16, 16), (16, 2)]
    params = {}
    for i, (fin, fout) in enumerate(sizes, start=1):
        key, kw, kb = jax.random.split(key, 3)
        bound = 1.0 / jnp.sqrt(fin)
        params[f"w{i}"] = jax.random.uniform(
            kw, (fout, fin), jnp.float32, minval=-bound, maxval=bound)
        params[f"b{i}"] = jax.random.uniform(
            kb, (fout,), jnp.float32, minval=-bound, maxval=bound)
    return params


def reference_forward(x, params):
    """Exact f32 reference matching the PyTorch module's semantics."""
    h = jnp.maximum(x @ params["w1"].T + params["b1"], 0.0)
    h = jnp.maximum(h @ params["w2"].T + params["b2"], 0.0)
    h = jnp.maximum(h @ params["w3"].T + params["b3"], 0.0)
    return h @ params["w4"].T + params["b4"]


def reference_forward_bf16(x, params):
    """Emulates the kernel's precision: bf16 operands, f32 accumulate, f32 bias/output."""
    bf, f32 = jnp.bfloat16, jnp.float32
    h = x.astype(bf).astype(f32)
    for i in range(1, 5):
        w = params[f"w{i}"].astype(bf).astype(f32)
        h = h @ w.T + params[f"b{i}"]
        if i < 4:
            h = jnp.maximum(h, 0.0).astype(bf).astype(f32)
    return h


if __name__ == "__main__":
    key = jax.random.PRNGKey(0)
    key, kx = jax.random.split(key)

    # Demo batch; with the adaptive tiling this becomes a 2-step pipelined "parallel" grid.
    batch = 1024
    x = jax.random.normal(kx, (batch, 4), dtype=jnp.float32)
    params = init_params(key)

    y = jax.block_until_ready(net_forward(x, params))
    assert y.shape == (batch, 2)

    # Tight check against a reference that emulates the kernel's bf16-operand / f32-acc math.
    y_ref_bf16 = reference_forward_bf16(x, params)
    assert jnp.allclose(y, y_ref_bf16, atol=1e-3, rtol=1e-3)

    # Loose sanity check against the exact f32 PyTorch-equivalent forward.
    y_ref_f32 = reference_forward(x, params)
    assert jnp.allclose(y, y_ref_f32, atol=1e-1, rtol=1e-1)

    # Feature-major entry point (no wrapper transposes) must agree with the standard path.
    y_fm = jax.block_until_ready(net_forward_feature_major(x.T, params))
    assert y_fm.shape == (2, batch)
    assert jnp.allclose(y_fm.T, y, atol=1e-5, rtol=1e-5)

    # Tiny, non-tile-aligned batch (padding / single-step grid path).
    x_small = jax.random.normal(kx, (8, 4), dtype=jnp.float32)
    y_small = jax.block_until_ready(net_forward(x_small, params))
    assert y_small.shape == (8, 2)
    assert jnp.allclose(y_small, reference_forward_bf16(x_small, params), atol=1e-3, rtol=1e-3)

    print("KERNEL_OK")
</pallas_src>

<mosaic_0001>
module attributes {stable_mosaic.version = 11 : i64} {
  func.func @mlp_kernel(%arg0: i32, %arg1: memref<4x512xbf16, #tpu.memory_space<vmem>>, %arg2: memref<16x4xbf16, #tpu.memory_space<vmem>>, %arg3: memref<16x1xf32, #tpu.memory_space<vmem>>, %arg4: memref<16x16xbf16, #tpu.memory_space<vmem>>, %arg5: memref<16x1xf32, #tpu.memory_space<vmem>>, %arg6: memref<16x16xbf16, #tpu.memory_space<vmem>>, %arg7: memref<16x1xf32, #tpu.memory_space<vmem>>, %arg8: memref<2x16xbf16, #tpu.memory_space<vmem>>, %arg9: memref<2x1xf32, #tpu.memory_space<vmem>>, %arg10: memref<2x512xf32, #tpu.memory_space<vmem>>) attributes {dimension_semantics = [#tpu.dimension_semantics<parallel>], iteration_bounds = array<i64: 2>, scalar_prefetch = 0 : i64, scratch_operands = 0 : i64, tpu.core_type = #tpu.core_type<tc>, window_params = [{transform_indices = @transform_0, window_bounds = array<i64: 4, 512>}, {pipeline_mode = #tpu.pipeline_mode<synchronous>, transform_indices = @transform_1, window_bounds = array<i64: 16, 4>}, {pipeline_mode = #tpu.pipeline_mode<synchronous>, transform_indices = @transform_2, window_bounds = array<i64: 16, 1>}, {pipeline_mode = #tpu.pipeline_mode<synchronous>, transform_indices = @transform_3, window_bounds = array<i64: 16, 16>}, {pipeline_mode = #tpu.pipeline_mode<synchronous>, transform_indices = @transform_4, window_bounds = array<i64: 16, 1>}, {pipeline_mode = #tpu.pipeline_mode<synchronous>, transform_indices = @transform_5, window_bounds = array<i64: 16, 16>}, {pipeline_mode = #tpu.pipeline_mode<synchronous>, transform_indices = @transform_6, window_bounds = array<i64: 16, 1>}, {pipeline_mode = #tpu.pipeline_mode<synchronous>, transform_indices = @transform_7, window_bounds = array<i64: 2, 16>}, {pipeline_mode = #tpu.pipeline_mode<synchronous>, transform_indices = @transform_8, window_bounds = array<i64: 2, 1>}, {transform_indices = @transform_9, window_bounds = array<i64: 2, 512>}]} {
    %c0 = arith.constant 0 : index
    %c0_0 = arith.constant 0 : index
    %0 = vector.load %arg1[%c0, %c0_0] : memref<4x512xbf16, #tpu.memory_space<vmem>>, vector<4x512xbf16>
    %c0_1 = arith.constant 0 : index
    %c0_2 = arith.constant 0 : index
    %1 = vector.load %arg2[%c0_1, %c0_2] : memref<16x4xbf16, #tpu.memory_space<vmem>>, vector<16x4xbf16>
    %cst = arith.constant dense<0.000000e+00> : vector<16x512xf32>
    %2 = tpu.matmul %1, %0, %cst {dimension_numbers = #tpu.dot_dimension_numbers<[1], [0], [0], [1], [0, 0, 1, 1], [], []>} : vector<16x4xbf16>, vector<4x512xbf16>, vector<16x512xf32> -> vector<16x512xf32>
    %c0_3 = arith.constant 0 : index
    %c0_4 = arith.constant 0 : index
    %3 = vector.load %arg3[%c0_3, %c0_4] : memref<16x1xf32, #tpu.memory_space<vmem>>, vector<16x1xf32>
    %4 = vector.broadcast %3 : vector<16x1xf32> to vector<16x512xf32>
    %5 = arith.addf %2, %4 : vector<16x512xf32>
    %cst_5 = arith.constant 0.000000e+00 : f32
    %6 = vector.broadcast %cst_5 : f32 to vector<16x512xf32>
    %7 = arith.maximumf %5, %6 : vector<16x512xf32>
    %8 = arith.truncf %7 : vector<16x512xf32> to vector<16x512xbf16>
    %c0_6 = arith.constant 0 : index
    %c0_7 = arith.constant 0 : index
    %9 = vector.load %arg4[%c0_6, %c0_7] : memref<16x16xbf16, #tpu.memory_space<vmem>>, vector<16x16xbf16>
    %cst_8 = arith.constant dense<0.000000e+00> : vector<16x512xf32>
    %10 = tpu.matmul %9, %8, %cst_8 {dimension_numbers = #tpu.dot_dimension_numbers<[1], [0], [0], [1], [0, 0, 1, 1], [], []>} : vector<16x16xbf16>, vector<16x512xbf16>, vector<16x512xf32> -> vector<16x512xf32>
    %c0_9 = arith.constant 0 : index
    %c0_10 = arith.constant 0 : index
    %11 = vector.load %arg5[%c0_9, %c0_10] : memref<16x1xf32, #tpu.memory_space<vmem>>, vector<16x1xf32>
    %12 = vector.broadcast %11 : vector<16x1xf32> to vector<16x512xf32>
    %13 = arith.addf %10, %12 : vector<16x512xf32>
    %cst_11 = arith.constant 0.000000e+00 : f32
    %14 = vector.broadcast %cst_11 : f32 to vector<16x512xf32>
    %15 = arith.maximumf %13, %14 : vector<16x512xf32>
    %16 = arith.truncf %15 : vector<16x512xf32> to vector<16x512xbf16>
    %c0_12 = arith.constant 0 : index
    %c0_13 = arith.constant 0 : index
    %17 = vector.load %arg6[%c0_12, %c0_13] : memref<16x16xbf16, #tpu.memory_space<vmem>>, vector<16x16xbf16>
    %cst_14 = arith.constant dense<0.000000e+00> : vector<16x512xf32>
    %18 = tpu.matmul %17, %16, %cst_14 {dimension_numbers = #tpu.dot_dimension_numbers<[1], [0], [0], [1], [0, 0, 1, 1], [], []>} : vector<16x16xbf16>, vector<16x512xbf16>, vector<16x512xf32> -> vector<16x512xf32>
    %c0_15 = arith.constant 0 : index
    %c0_16 = arith.constant 0 : index
    %19 = vector.load %arg7[%c0_15, %c0_16] : memref<16x1xf32, #tpu.memory_space<vmem>>, vector<16x1xf32>
    %20 = vector.broadcast %19 : vector<16x1xf32> to vector<16x512xf32>
    %21 = arith.addf %18, %20 : vector<16x512xf32>
    %cst_17 = arith.constant 0.000000e+00 : f32
    %22 = vector.broadcast %cst_17 : f32 to vector<16x512xf32>
    %23 = arith.maximumf %21, %22 : vector<16x512xf32>
    %24 = arith.truncf %23 : vector<16x512xf32> to vector<16x512xbf16>
    %c0_18 = arith.constant 0 : index
    %c0_19 = arith.constant 0 : index
    %25 = vector.load %arg8[%c0_18, %c0_19] : memref<2x16xbf16, #tpu.memory_space<vmem>>, vector<2x16xbf16>
    %cst_20 = arith.constant dense<0.000000e+00> : vector<2x512xf32>
    %26 = tpu.matmul %25, %24, %cst_20 {dimension_numbers = #tpu.dot_dimension_numbers<[1], [0], [0], [1], [0, 0, 1, 1], [], []>} : vector<2x16xbf16>, vector<16x512xbf16>, vector<2x512xf32> -> vector<2x512xf32>
    %c0_21 = arith.constant 0 : index
    %c0_22 = arith.constant 0 : index
    %27 = vector.load %arg9[%c0_21, %c0_22] : memref<2x1xf32, #tpu.memory_space<vmem>>, vector<2x1xf32>
    %28 = vector.broadcast %27 : vector<2x1xf32> to vector<2x512xf32>
    %29 = arith.addf %26, %28 : vector<2x512xf32>
    %c0_23 = arith.constant 0 : index
    %c0_24 = arith.constant 0 : index
    %30 = vector.load %arg10[%c0_23, %c0_24] : memref<2x512xf32, #tpu.memory_space<vmem>>, vector<2x512xf32>
    tpu.vector_store %arg10[%c0_23, %c0_24], %29 {strides = array<i32>} : memref<2x512xf32, #tpu.memory_space<vmem>>, vector<2x512xf32>,
    return
  }
  func.func @transform_0(%arg0: i32) -> (i32, i32) {
    %c0_i32 = arith.constant 0 : i32
    %c0_i32_0 = arith.constant 0 : i32
    return %c0_i32, %arg0 : i32, i32
  }
  func.func @transform_1(%arg0: i32) -> (i32, i32) {
    %c0_i32 = arith.constant 0 : i32
    %c0_i32_0 = arith.constant 0 : i32
    %c0_i32_1 = arith.constant 0 : i32
    return %c0_i32, %c0_i32_0 : i32, i32
  }
  func.func @transform_2(%arg0: i32) -> (i32, i32) {
    %c0_i32 = arith.constant 0 : i32
    %c0_i32_0 = arith.constant 0 : i32
    %c0_i32_1 = arith.constant 0 : i32
    return %c0_i32, %c0_i32_0 : i32, i32
  }
  func.func @transform_3(%arg0: i32) -> (i32, i32) {
    %c0_i32 = arith.constant 0 : i32
    %c0_i32_0 = arith.constant 0 : i32
    %c0_i32_1 = arith.constant 0 : i32
    return %c0_i32, %c0_i32_0 : i32, i32
  }
  func.func @transform_4(%arg0: i32) -> (i32, i32) {
    %c0_i32 = arith.constant 0 : i32
    %c0_i32_0 = arith.constant 0 : i32
    %c0_i32_1 = arith.constant 0 : i32
    return %c0_i32, %c0_i32_0 : i32, i32
  }
  func.func @transform_5(%arg0: i32) -> (i32, i32) {
    %c0_i32 = arith.constant 0 : i32
    %c0_i32_0 = arith.constant 0 : i32
    %c0_i32_1 = arith.constant 0 : i32
    return %c0_i32, %c0_i32_0 : i32, i32
  }
  func.func @transform_6(%arg0: i32) -> (i32, i32) {
    %c0_i32 = arith.constant 0 : i32
    %c0_i32_0 = arith.constant 0 : i32
    %c0_i32_1 = arith.constant 0 : i32
    return %c0_i32, %c0_i32_0 : i32, i32
  }
  func.func @transform_7(%arg0: i32) -> (i32, i32) {
    %c0_i32 = arith.constant 0 : i32
    %c0_i32_0 = arith.constant 0 : i32
    %c0_i32_1 = arith.constant 0 : i32
    return %c0_i32, %c0_i32_0 : i32, i32
  }
  func.func @transform_8(%arg0: i32) -> (i32, i32) {
    %c0_i32 = arith.constant 0 : i32
    %c0_i32_0 = arith.constant 0 : i32
    %c0_i32_1 = arith.constant 0 : i32
    return %c0_i32, %c0_i32_0 : i32, i32
  }
  func.func @transform_9(%arg0: i32) -> (i32, i32) {
    %c0_i32 = arith.constant 0 : i32
    %c0_i32_0 = arith.constant 0 : i32
    return %c0_i32, %arg0 : i32, i32
  }
}

</mosaic_0001>

<llo_original>
// kernel: tpu_custom_call.1
$region0: #{tpu_custom_call.1}
  #allocation0 [shape = 'u32[]', space=smem, size = 0x4, offset = 0x4, fixed_abs, tag = 'smem constant byte address 0x4 - core index']
  #allocation1 [shape = 'u32[72,128]{1,0:T(1,128)}', space=vmem, size = 0x9000, scoped, tag = 'internal scratch']
  %s0 = inlined_call_operand.vmem [shape: bf16[4,1024], index: 0, kind: input, shape index: {}]
  %s1 = inlined_call_operand.vmem [shape: bf16[16,4], index: 1, kind: input, shape index: {}]
  %s2 = inlined_call_operand.vmem [shape: f32[16,1], index: 2, kind: input, shape index: {}]
  %s3 = inlined_call_operand.vmem [shape: bf16[16,16], index: 3, kind: input, shape index: {}]
  %s4 = inlined_call_operand.vmem [shape: f32[16,1], index: 4, kind: input, shape index: {}]
  %s5 = inlined_call_operand.vmem [shape: bf16[16,16], index: 5, kind: input, shape index: {}]
  %s6 = inlined_call_operand.vmem [shape: f32[16,1], index: 6, kind: input, shape index: {}]
  %s7 = inlined_call_operand.vmem [shape: bf16[2,16], index: 7, kind: input, shape index: {}]
  %s8 = inlined_call_operand.vmem [shape: f32[2,1], index: 8, kind: input, shape index: {}]
  %s9 = inlined_call_operand.hbm [shape: f32[2,1024], index: 9, kind: output, shape index: {}]
  %s10 = sld [smem:[#allocation0]]
  $region69: #{tpu_custom_call.1} parent=0
    _
  %s12 = ssub.s32 1, %s10
  %s13 = scalar_select 0, %s12, %s10
  $region1: #{tpu_custom_call.1} parent=0
    #allocation2 [shape = 'u8[8192]{0}', space=vmem, size = 0x2000, scoped, tag = 'output window, operand 0']
    #allocation3 [shape = 's32[2]{0}', space=sflag, size = 0x8, scoped, tag = 'scoped memory for tpu_custom_call.1']
    %14 = vsyncpa [#allocation3], 0
    %s15 = scalar_lea.sflag [#allocation3], 1
    %16 = vsyncpa %s15, 0
    loop: start=0, step=1, limit=4
    $region2: #{tpu_custom_call.1} parent=1 // loop_pre_header
      _
    $region3: #{tpu_custom_call.1} parent=1 // loop_header
      %s18 = sphi 0, %s22
      %p19 = scmp.ge.s32.totalorder %s18, 4
      %s28 = sphi 0, %s30
      %s31 = sphi 0, %s28
      %s32 = sphi 0, %s31
      %s48 = sphi 0, %s32
      %s52 = sphi 0, %s52
      %s54 = sphi 0, %s52
      %s55 = sphi 0, %s54
      %s69 = sphi 0, %s55
      %s73 = sphi 0, %s73
      %s75 = sphi 0, %s73
      %s76 = sphi 0, %s75
      %s90 = sphi 0, %s76
      %s94 = sphi 0, %s94
      %s96 = sphi 0, %s94
      %s97 = sphi 0, %s96
      %s111 = sphi 0, %s97
      %s115 = sphi 0, %s115
      %s117 = sphi 0, %s115
      %s118 = sphi 0, %s117
      %s132 = sphi 0, %s118
      %s136 = sphi 0, %s136
      %s138 = sphi 0, %s136
      %s139 = sphi 0, %s138
      %s153 = sphi 0, %s139
      %s157 = sphi 0, %s157
      %s159 = sphi 0, %s157
      %s160 = sphi 0, %s159
      %s174 = sphi 0, %s160
      %s178 = sphi 0, %s178
      %s180 = sphi 0, %s178
      %s181 = sphi 0, %s180
      %s195 = sphi 0, %s181
      %s199 = sphi 0, %s199
      %s201 = sphi 0, %s199
      %s202 = sphi 0, %s201
      %s216 = sphi 0, %s202
      %s222 = sphi 0, %s224
      %s225 = sphi 0, %s222
      %s226 = sphi 0, %s225
      %s242 = sphi 0, %s226
    $region4: #{tpu_custom_call.1} parent=1 // loop_header_branch
      %21 = sbr.rel (%p19) target = $region8
    $region5: #{tpu_custom_call.1} parent=1 // loop_body
      %s23 = ssub.s32 %s18, 1
      %s24 = ssub.s32 %s18, 2
      %s25 = sadd.s32 %s18, 1
      %s26 = ssub.s32 %s18, %s25
      %p27 = scmp.eq.s32.totalorder %s26, 0
      %s29 = sadd.s32 %s28, 1
      %s30 = scalar_select %p27, %s28, %s29
      %p33 = pneg %p27
      %p34 = scmp.eq.s32.totalorder %s18, 1
      %p35 = por %p33, %p34
      %p36 = scmp.ne.s32.totalorder %s28, %s31
      %p37 = scmp.eq.s32.totalorder %s18, 0
      %p38 = por %p36, %p37
      %p39 = scmp.ne.s32.totalorder %s28, %s31
      %p40 = scmp.eq.s32.totalorder %s23, 1
      %p41 = por %p39, %p40
      %p42 = scmp.ne.s32.totalorder %s31, %s32
      %p43 = scmp.eq.s32.totalorder %s23, 0
      %p44 = por %p42, %p43
      %p45 = scmp.ne.s32.totalorder %s31, %s32
      %p46 = scmp.eq.s32.totalorder %s24, 1
      %p47 = por %p45, %p46
      %p49 = scmp.ne.s32.totalorder %s32, %s48
      %p50 = scmp.eq.s32.totalorder %s24, 0
      %p51 = por %p49, %p50
      %s53 = sadd.s32 %s52, 1
      %p56 = scmp.eq.s32.totalorder %s18, 1
      %p57 = scmp.ne.s32.totalorder %s52, %s54
      %p58 = scmp.eq.s32.totalorder %s18, 0
      %p59 = por %p57, %p58
      %p60 = scmp.ne.s32.totalorder %s52, %s54
      %p61 = scmp.eq.s32.totalorder %s23, 1
      %p62 = por %p60, %p61
      %p63 = scmp.ne.s32.totalorder %s54, %s55
      %p64 = scmp.eq.s32.totalorder %s23, 0
      %p65 = por %p63, %p64
      %p66 = scmp.ne.s32.totalorder %s54, %s55
      %p67 = scmp.eq.s32.totalorder %s24, 1
      %p68 = por %p66, %p67
      %p70 = scmp.ne.s32.totalorder %s55, %s69
      %p71 = scmp.eq.s32.totalorder %s24, 0
      %p72 = por %p70, %p71
      %s74 = sadd.s32 %s73, 1
      %p77 = scmp.eq.s32.totalorder %s18, 1
      %p78 = scmp.ne.s32.totalorder %s73, %s75
      %p79 = scmp.eq.s32.totalorder %s18, 0
      %p80 = por %p78, %p79
      %p81 = scmp.ne.s32.totalorder %s73, %s75
      %p82 = scmp.eq.s32.totalorder %s23, 1
      %p83 = por %p81, %p82
      %p84 = scmp.ne.s32.totalorder %s75, %s76
      %p85 = scmp.eq.s32.totalorder %s23, 0
      %p86 = por %p84, %p85
      %p87 = scmp.ne.s32.totalorder %s75, %s76
      %p88 = scmp.eq.s32.totalorder %s24, 1
      %p89 = por %p87, %p88
      %p91 = scmp.ne.s32.totalorder %s76, %s90
      %p92 = scmp.eq.s32.totalorder %s24, 0
      %p93 = por %p91, %p92
      %s95 = sadd.s32 %s94, 1
      %p98 = scmp.eq.s32.totalorder %s18, 1
      %p99 = scmp.ne.s32.totalorder %s94, %s96
      %p100 = scmp.eq.s32.totalorder %s18, 0
      %p101 = por %p99, %p100
      %p102 = scmp.ne.s32.totalorder %s94, %s96
      %p103 = scmp.eq.s32.totalorder %s23, 1
      %p104 = por %p102, %p103
      %p105 = scmp.ne.s32.totalorder %s96, %s97
      %p106 = scmp.eq.s32.totalorder %s23, 0
      %p107 = por %p105, %p106
      %p108 = scmp.ne.s32.totalorder %s96, %s97
      %p109 = scmp.eq.s32.totalorder %s24, 1
      %p110 = por %p108, %p109
      %p112 = scmp.ne.s32.totalorder %s97, %s111
      %p113 = scmp.eq.s32.totalorder %s24, 0
      %p114 = por %p112, %p113
      %s116 = sadd.s32 %s115, 1
      %p119 = scmp.eq.s32.totalorder %s18, 1
      %p120 = scmp.ne.s32.totalorder %s115, %s117
      %p121 = scmp.eq.s32.totalorder %s18, 0
      %p122 = por %p120, %p121
      %p123 = scmp.ne.s32.totalorder %s115, %s117
      %p124 = scmp.eq.s32.totalorder %s23, 1
      %p125 = por %p123, %p124
      %p126 = scmp.ne.s32.totalorder %s117, %s118
      %p127 = scmp.eq.s32.totalorder %s23, 0
      %p128 = por %p126, %p127
      %p129 = scmp.ne.s32.totalorder %s117, %s118
      %p130 = scmp.eq.s32.totalorder %s24, 1
      %p131 = por %p129, %p130
      %p133 = scmp.ne.s32.totalorder %s118, %s132
      %p134 = scmp.eq.s32.totalorder %s24, 0
      %p135 = por %p133, %p134
      %s137 = sadd.s32 %s136, 1
      %p140 = scmp.eq.s32.totalorder %s18, 1
      %p141 = scmp.ne.s32.totalorder %s136, %s138
      %p142 = scmp.eq.s32.totalorder %s18, 0
      %p143 = por %p141, %p142
      %p144 = scmp.ne.s32.totalorder %s136, %s138
      %p145 = scmp.eq.s32.totalorder %s23, 1
      %p146 = por %p144, %p145
      %p147 = scmp.ne.s32.totalorder %s138, %s139
      %p148 = scmp.eq.s32.totalorder %s23, 0
      %p149 = por %p147, %p148
      %p150 = scmp.ne.s32.totalorder %s138, %s139
      %p151 = scmp.eq.s32.totalorder %s24, 1
      %p152 = por %p150, %p151
      %p154 = scmp.ne.s32.totalorder %s139, %s153
      %p155 = scmp.eq.s32.totalorder %s24, 0
      %p156 = por %p154, %p155
      %s158 = sadd.s32 %s157, 1
      %p161 = scmp.eq.s32.totalorder %s18, 1
      %p162 = scmp.ne.s32.totalorder %s157, %s159
      %p163 = scmp.eq.s32.totalorder %s18, 0
      %p164 = por %p162, %p163
      %p165 = scmp.ne.s32.totalorder %s157, %s159
      %p166 = scmp.eq.s32.totalorder %s23, 1
      %p167 = por %p165, %p166
      %p168 = scmp.ne.s32.totalorder %s159, %s160
      %p169 = scmp.eq.s32.totalorder %s23, 0
      %p170 = por %p168, %p169
      %p171 = scmp.ne.s32.totalorder %s159, %s160
      %p172 = scmp.eq.s32.totalorder %s24, 1
      %p173 = por %p171, %p172
      %p175 = scmp.ne.s32.totalorder %s160, %s174
      %p176 = scmp.eq.s32.totalorder %s24, 0
      %p177 = por %p175, %p176
      %s179 = sadd.s32 %s178, 1
      %p182 = scmp.eq.s32.totalorder %s18, 1
      %p183 = scmp.ne.s32.totalorder %s178, %s180
      %p184 = scmp.eq.s32.totalorder %s18, 0
      %p185 = por %p183, %p184
      %p186 = scmp.ne.s32.totalorder %s178, %s180
      %p187 = scmp.eq.s32.totalorder %s23, 1
      %p188 = por %p186, %p187
      %p189 = scmp.ne.s32.totalorder %s180, %s181
      %p190 = scmp.eq.s32.totalorder %s23, 0
      %p191 = por %p189, %p190
      %p192 = scmp.ne.s32.totalorder %s180, %s181
      %p193 = scmp.eq.s32.totalorder %s24, 1
      %p194 = por %p192, %p193
      %p196 = scmp.ne.s32.totalorder %s181, %s195
      %p197 = scmp.eq.s32.totalorder %s24, 0
      %p198 = por %p196, %p197
      %s200 = sadd.s32 %s199, 1
      %p203 = scmp.eq.s32.totalorder %s18, 1
      %p204 = scmp.ne.s32.totalorder %s199, %s201
      %p205 = scmp.eq.s32.totalorder %s18, 0
      %p206 = por %p204, %p205
      %p207 = scmp.ne.s32.totalorder %s199, %s201
      %p208 = scmp.eq.s32.totalorder %s23, 1
      %p209 = por %p207, %p208
      %p210 = scmp.ne.s32.totalorder %s201, %s202
      %p211 = scmp.eq.s32.totalorder %s23, 0
      %p212 = por %p210, %p211
      %p213 = scmp.ne.s32.totalorder %s201, %s202
      %p214 = scmp.eq.s32.totalorder %s24, 1
      %p215 = por %p213, %p214
      %p217 = scmp.ne.s32.totalorder %s202, %s216
      %p218 = scmp.eq.s32.totalorder %s24, 0
      %p219 = por %p217, %p218
      %s220 = ssub.s32 %s18, %s25
      %p221 = scmp.eq.s32.totalorder %s220, 0
      %s223 = sadd.s32 %s222, 1
      %s224 = scalar_select %p221, %s222, %s223
      %p227 = pneg %p221
      %p228 = scmp.eq.s32.totalorder %s18, 1
      %p229 = por %p227, %p228
      %p230 = scmp.ne.s32.totalorder %s222, %s225
      %p231 = scmp.eq.s32.totalorder %s18, 0
      %p232 = por %p230, %p231
      %p233 = scmp.ne.s32.totalorder %s222, %s225
      %p234 = scmp.eq.s32.totalorder %s23, 1
      %p235 = por %p233, %p234
      %p236 = scmp.ne.s32.totalorder %s225, %s226
      %p237 = scmp.eq.s32.totalorder %s23, 0
      %p238 = por %p236, %p237
      %p239 = scmp.ne.s32.totalorder %s225, %s226
      %p240 = scmp.eq.s32.totalorder %s24, 1
      %p241 = por %p239, %p240
      %p243 = scmp.ne.s32.totalorder %s226, %s242
      %p244 = scmp.eq.s32.totalorder %s24, 0
      %p245 = por %p243, %p244
      %p246 = scmp.le.s32.totalorder 1, %s18
      %p247 = scmp.lt.s32.totalorder %s18, 3
      %p248 = pnand %p246, %p247
      %p249 = pneg %p248
      // Predicated region
      $region9: #{tpu_custom_call.1} parent=5 // pred_check
        _
      $region10: #{tpu_custom_call.1} parent=5 // pred_check_branch
        %251 = sbr.rel (%p248) target = $region12
      $region11: #{tpu_custom_call.1} parent=5 // pred_region
        %s252 = ssub.s32 %s18, 1
        // Predicated region
        $region13: #{tpu_custom_call.1} parent=11 // pred_check
          %p253 = pneg %p65
        $region14: #{tpu_custom_call.1} parent=11 // pred_check_branch
          %255 = sbr.rel (%p253) target = $region16
        $region15: #{tpu_custom_call.1} parent=11 // pred_region
          _
        $region16: #{tpu_custom_call.1} parent=11 // pred_fallthru
          _
        // Predicated region
        $region17: #{tpu_custom_call.1} parent=11 // pred_check
          %p256 = pneg %p86
        $region18: #{tpu_custom_call.1} parent=11 // pred_check_branch
          %258 = sbr.rel (%p256) target = $region20
        $region19: #{tpu_custom_call.1} parent=11 // pred_region
          _
        $region20: #{tpu_custom_call.1} parent=11 // pred_fallthru
          _
        // Predicated region
        $region21: #{tpu_custom_call.1} parent=11 // pred_check
          %p259 = pneg %p107
        $region22: #{tpu_custom_call.1} parent=11 // pred_check_branch
          %261 = sbr.rel (%p259) target = $region24
        $region23: #{tpu_custom_call.1} parent=11 // pred_region
          _
        $region24: #{tpu_custom_call.1} parent=11 // pred_fallthru
          _
        // Predicated region
        $region25: #{tpu_custom_call.1} parent=11 // pred_check
          %p262 = pneg %p128
        $region26: #{tpu_custom_call.1} parent=11 // pred_check_branch
          %264 = sbr.rel (%p262) target = $region28
        $region27: #{tpu_custom_call.1} parent=11 // pred_region
          _
        $region28: #{tpu_custom_call.1} parent=11 // pred_fallthru
          _
        // Predicated region
        $region29: #{tpu_custom_call.1} parent=11 // pred_check
          %p265 = pneg %p149
        $region30: #{tpu_custom_call.1} parent=11 // pred_check_branch
          %267 = sbr.rel (%p265) target = $region32
        $region31: #{tpu_custom_call.1} parent=11 // pred_region
          _
        $region32: #{tpu_custom_call.1} parent=11 // pred_fallthru
          _
        // Predicated region
        $region33: #{tpu_custom_call.1} parent=11 // pred_check
          %p268 = pneg %p170
        $region34: #{tpu_custom_call.1} parent=11 // pred_check_branch
          %270 = sbr.rel (%p268) target = $region36
        $region35: #{tpu_custom_call.1} parent=11 // pred_region
          _
        $region36: #{tpu_custom_call.1} parent=11 // pred_fallthru
          _
        // Predicated region
        $region37: #{tpu_custom_call.1} parent=11 // pred_check
          %p271 = pneg %p191
        $region38: #{tpu_custom_call.1} parent=11 // pred_check_branch
          %273 = sbr.rel (%p271) target = $region40
        $region39: #{tpu_custom_call.1} parent=11 // pred_region
          _
        $region40: #{tpu_custom_call.1} parent=11 // pred_fallthru
          _
        // Predicated region
        $region41: #{tpu_custom_call.1} parent=11 // pred_check
          %p274 = pneg %p212
        $region42: #{tpu_custom_call.1} parent=11 // pred_check_branch
          %276 = sbr.rel (%p274) target = $region44
        $region43: #{tpu_custom_call.1} parent=11 // pred_region
          _
        $region44: #{tpu_custom_call.1} parent=11 // pred_fallthru
          _
      $region12: #{tpu_custom_call.1} parent=5 // pred_fallthru
        _
      %p277 = scmp.lt.s32.totalorder %s18, 2
      // Predicated region
      $region45: #{tpu_custom_call.1} parent=5 // pred_check
        %p278 = pneg %p277
      $region46: #{tpu_custom_call.1} parent=5 // pred_check_branch
        %280 = sbr.rel (%p278) target = $region48
      $region47: #{tpu_custom_call.1} parent=5 // pred_region
        // Predicated region
        $region49: #{tpu_custom_call.1} parent=47 // pred_check
          %p281 = pneg %p38
        $region50: #{tpu_custom_call.1} parent=47 // pred_check_branch
          %283 = sbr.rel (%p281) target = $region52
        $region51: #{tpu_custom_call.1} parent=47 // pred_region
          %s284 = smul.u32 4, %s18
          %p285 = scmp.lt.s32.totalorder %s284, 7
          %s286 = scalar_select %p285, %s284, 7
          %s287 = smul.addr %s286, 2
          %s288 = scalar_lea.vmem %s0, %s287
          %s289 = smul.u32 4, %s18
        $region52: #{tpu_custom_call.1} parent=47 // pred_fallthru
          _
      $region48: #{tpu_custom_call.1} parent=5 // pred_fallthru
        _
      %p290 = scmp.le.s32.totalorder 1, %s18
      %p291 = scmp.lt.s32.totalorder %s18, 3
      %p292 = pnand %p290, %p291
      %p293 = pneg %p292
      // Predicated region
      $region53: #{tpu_custom_call.1} parent=5 // pred_check
        _
      $region54: #{tpu_custom_call.1} parent=5 // pred_check_branch
        %295 = sbr.rel (%p292) target = $region56
      $region55: #{tpu_custom_call.1} parent=5 // pred_region
        %s296 = ssub.s32 %s18, 1
        %s297 = smul.u32 4, %s23
        %p298 = scmp.lt.s32.totalorder %s297, 7
        %s299 = scalar_select %p298, %s297, 7
        %s300 = smul.addr %s299, 2
        %s301 = scalar_lea.vmem %s0, %s300
        %p302 = pneg %p44
        %p303 = pneg %p41
        %p304 = pneg %p65
        %p305 = pneg %p62
        %p306 = pneg %p86
        %p307 = pneg %p83
        %p308 = pneg %p107
        %p309 = pneg %p104
        %p310 = pneg %p128
        %p311 = pneg %p125
        %p312 = pneg %p149
        %p313 = pneg %p146
        %p314 = pneg %p170
        %p315 = pneg %p167
        %p316 = pneg %p191
        %p317 = pneg %p188
        %p318 = pneg %p212
        %p319 = pneg %p209
        %p320 = pneg %p238
        %p321 = pneg %p235
        %s322 = sand.u32 %s225, 1
        %s323 = scalar_lea.sflag [#allocation3], %s322
        %s324 = sand.u32 %s225, 1
        %s325 = smul.addr %s324, 8
        %s326 = scalar_lea.vmem [#allocation2], %s325
        %s327 = smul.u32 4, %s23
        %p328 = scmp.lt.s32.totalorder %s327, 7
        %s329 = scalar_select %p328, %s327, 7
        %s330 = smul.addr %s329, 2
        %s331 = scalar_lea.vmem %s0, %s330
        %s332 = smul.u32 4, %s23
        %s333 = smul.u32 4, %s23
        %v335 = vld [vmem:[%s331] sm:$0xff]
        %v336 = vld [vmem:[%s1] sm:$0xf]
        %v337 = vld [vmem:[%s1 + $0x4] sm:$0xf]
        %v338 = vld [vmem:[%s2] sm:$0xff]
        %v339 = vld [vmem:[%s2 + $0x8] sm:$0xff]
        %341 = vset.pattern.permute.xlu0 0
        %342 = vperm.xlu0 %341, %v338
        %v343 = vpop.permute.xlu0 %342
        %346 = vset.pattern.permute.xlu0 0
        %347 = vperm.xlu0 %346, %v339
        %v348 = vpop.permute.xlu0 %347
        %v352 = vunpack.c.l.b16 %v336
        %v353 = vunpack.c.l.b16 %v337
        %v354 = vpack.c.b16 %v353, %v352
        %356 = vst [vmem:[#allocation1] ss:$4 sm:$0xff] %v335
        %v357 = vld.sshfl [vmem:[#allocation1] sm:$0xff pattern:$0x73625140]
        %v358 = vld.sshfl [vmem:[#allocation1 + $0x8] sm:$0xff pattern:$0x73625140]
        %v359 = vld.sshfl [vmem:[#allocation1 + $0x10] sm:$0xff pattern:$0x73625140]
        %v360 = vld.sshfl [vmem:[#allocation1 + $0x18] sm:$0xff pattern:$0x73625140]
        %vm361 = vcmask 31744
        %v363 = vsel %vm361, %v354, 0
        %vm365 = vcmask 1041408
        %v366 = vsel %vm365, %v357, 0
        %v368 = vsel %vm365, %v358, 0
        %v370 = vsel %vm365, %v359, 0
        %v372 = vsel %vm365, %v360, 0
        %374 = vmatpush.bf16.msra.mxu0 0
        %375 = vmatpush.bf16.msra.mxu0 0
        %376 = vmatpush.bf16.msra.mxu0 0
        %377 = vmatpush.bf16.msra.mxu0 0
        %378 = vmatpush.bf16.msra.mxu0 0
        %379 = vmatpush.bf16.msra.mxu0 0
        %380 = vmatpush.bf16.msra.mxu0 0
        %381 = vmatpush.bf16.msra.mxu0 %v366
        %382 = vmatmul.bf16.gmra.mxu0 %v363
        %v383 = vpop.f32.mrf.mxu0
        %v384 = vadd.f32 %v343, %v383
        %v385 = vpop.f32.mrf.mxu0
        %v386 = vadd.f32 %v348, %v385
        %387 = vdwg.mxu0
        %388 = vmatpush.bf16.msra.mxu0 0
        %389 = vmatpush.bf16.msra.mxu0 0
        %390 = vmatpush.bf16.msra.mxu0 0
        %391 = vmatpush.bf16.msra.mxu0 0
        %392 = vmatpush.bf16.msra.mxu0 0
        %393 = vmatpush.bf16.msra.mxu0 0
        %394 = vmatpush.bf16.msra.mxu0 0
        %395 = vmatpush.bf16.msra.mxu0 %v368
        %396 = vmatmul.bf16.gmra.mxu0 %v363
        %v397 = vpop.f32.mrf.mxu0
        %v398 = vadd.f32 %v343, %v397
        %v399 = vpop.f32.mrf.mxu0
        %v400 = vadd.f32 %v348, %v399
        %401 = vdwg.mxu0
        %402 = vmatpush.bf16.msra.mxu0 0
        %403 = vmatpush.bf16.msra.mxu0 0
        %404 = vmatpush.bf16.msra.mxu0 0
        %405 = vmatpush.bf16.msra.mxu0 0
        %406 = vmatpush.bf16.msra.mxu0 0
        %407 = vmatpush.bf16.msra.mxu0 0
        %408 = vmatpush.bf16.msra.mxu0 0
        %409 = vmatpush.bf16.msra.mxu0 %v370
        %410 = vmatmul.bf16.gmra.mxu0 %v363
        %v411 = vpop.f32.mrf.mxu0
        %v412 = vadd.f32 %v343, %v411
        %v413 = vpop.f32.mrf.mxu0
        %v414 = vadd.f32 %v348, %v413
        %415 = vdwg.mxu0
        %416 = vmatpush.bf16.msra.mxu0 0
        %417 = vmatpush.bf16.msra.mxu0 0
        %418 = vmatpush.bf16.msra.mxu0 0
        %419 = vmatpush.bf16.msra.mxu0 0
        %420 = vmatpush.bf16.msra.mxu0 0
        %421 = vmatpush.bf16.msra.mxu0 0
        %422 = vmatpush.bf16.msra.mxu0 0
        %423 = vmatpush.bf16.msra.mxu0 %v372
        %424 = vmatmul.bf16.gmra.mxu0 %v363
        %v425 = vpop.f32.mrf.mxu0
        %v426 = vadd.f32 %v343, %v425
        %v427 = vpop.f32.mrf.mxu0
        %v428 = vadd.f32 %v348, %v427
        %429 = vdwg.mxu0
        %v430 = vmax.f32 %v384, 0.0
        %v431 = vmax.f32 %v398, 0.0
        %v432 = vmax.f32 %v412, 0.0
        %v433 = vmax.f32 %v426, 0.0
        %v434 = vmax.f32 %v386, 0.0
        %v435 = vmax.f32 %v400, 0.0
        %v436 = vmax.f32 %v414, 0.0
        %v437 = vmax.f32 %v428, 0.0
        %v438 = vpack.c.bf16 %v434, %v430
        %v439 = vpack.c.bf16 %v435, %v431
        %v440 = vpack.c.bf16 %v436, %v432
        %v441 = vpack.c.bf16 %v437, %v433
        %v442 = vld [vmem:[%s3] sm:$0xf]
        %v443 = vld [vmem:[%s3 + $0x4] sm:$0xf]
        %v444 = vld [vmem:[%s4] sm:$0xff]
        %v445 = vld [vmem:[%s4 + $0x8] sm:$0xff]
        %447 = vset.pattern.permute.xlu0 0
        %448 = vperm.xlu0 %447, %v444
        %v449 = vpop.permute.xlu0 %448
        %452 = vset.pattern.permute.xlu0 0
        %453 = vperm.xlu0 %452, %v445
        %v454 = vpop.permute.xlu0 %453
        %v458 = vunpack.c.l.b16 %v442
        %v459 = vunpack.c.l.b16 %v443
        %v460 = vpack.c.b16 %v459, %v458
        %vm461 = vcmask 130048
        %v463 = vsel %vm461, %v460, 0
        %465 = vmatpush.bf16.msra.mxu0 0
        %466 = vmatpush.bf16.msra.mxu0 0
        %467 = vmatpush.bf16.msra.mxu0 0
        %468 = vmatpush.bf16.msra.mxu0 0
        %469 = vmatpush.bf16.msra.mxu0 0
        %470 = vmatpush.bf16.msra.mxu0 0
        %471 = vmatpush.bf16.msra.mxu0 0
        %472 = vmatpush.bf16.msra.mxu0 %v438
        %473 = vmatmul.bf16.gmra.mxu0 %v463
        %v474 = vpop.f32.mrf.mxu0
        %v475 = vadd.f32 %v449, %v474
        %v476 = vpop.f32.mrf.mxu0
        %v477 = vadd.f32 %v454, %v476
        %478 = vdwg.mxu0
        %479 = vmatpush.bf16.msra.mxu0 0
        %480 = vmatpush.bf16.msra.mxu0 0
        %481 = vmatpush.bf16.msra.mxu0 0
        %482 = vmatpush.bf16.msra.mxu0 0
        %483 = vmatpush.bf16.msra.mxu0 0
        %484 = vmatpush.bf16.msra.mxu0 0
        %485 = vmatpush.bf16.msra.mxu0 0
        %486 = vmatpush.bf16.msra.mxu0 %v439
        %487 = vmatmul.bf16.gmra.mxu0 %v463
        %v488 = vpop.f32.mrf.mxu0
        %v489 = vadd.f32 %v449, %v488
        %v490 = vpop.f32.mrf.mxu0
        %v491 = vadd.f32 %v454, %v490
        %492 = vdwg.mxu0
        %493 = vmatpush.bf16.msra.mxu0 0
        %494 = vmatpush.bf16.msra.mxu0 0
        %495 = vmatpush.bf16.msra.mxu0 0
        %496 = vmatpush.bf16.msra.mxu0 0
        %497 = vmatpush.bf16.msra.mxu0 0
        %498 = vmatpush.bf16.msra.mxu0 0
        %499 = vmatpush.bf16.msra.mxu0 0
        %500 = vmatpush.bf16.msra.mxu0 %v440
        %501 = vmatmul.bf16.gmra.mxu0 %v463
        %v502 = vpop.f32.mrf.mxu0
        %v503 = vadd.f32 %v449, %v502
        %v504 = vpop.f32.mrf.mxu0
        %v505 = vadd.f32 %v454, %v504
        %506 = vdwg.mxu0
        %507 = vmatpush.bf16.msra.mxu0 0
        %508 = vmatpush.bf16.msra.mxu0 0
        %509 = vmatpush.bf16.msra.mxu0 0
        %510 = vmatpush.bf16.msra.mxu0 0
        %511 = vmatpush.bf16.msra.mxu0 0
        %512 = vmatpush.bf16.msra.mxu0 0
        %513 = vmatpush.bf16.msra.mxu0 0
        %514 = vmatpush.bf16.msra.mxu0 %v441
        %515 = vmatmul.bf16.gmra.mxu0 %v463
        %v516 = vpop.f32.mrf.mxu0
        %v517 = vadd.f32 %v449, %v516
        %v518 = vpop.f32.mrf.mxu0
        %v519 = vadd.f32 %v454, %v518
        %520 = vdwg.mxu0
        %v521 = vmax.f32 %v475, 0.0
        %v522 = vmax.f32 %v489, 0.0
        %v523 = vmax.f32 %v503, 0.0
        %v524 = vmax.f32 %v517, 0.0
        %v525 = vmax.f32 %v477, 0.0
        %v526 = vmax.f32 %v491, 0.0
        %v527 = vmax.f32 %v505, 0.0
        %v528 = vmax.f32 %v519, 0.0
        %v529 = vpack.c.bf16 %v525, %v521
        %v530 = vpack.c.bf16 %v526, %v522
        %v531 = vpack.c.bf16 %v527, %v523
        %v532 = vpack.c.bf16 %v528, %v524
        %v533 = vld [vmem:[%s5] sm:$0xf]
        %v534 = vld [vmem:[%s5 + $0x4] sm:$0xf]
        %v535 = vld [vmem:[%s6] sm:$0xff]
        %v536 = vld [vmem:[%s6 + $0x8] sm:$0xff]
        %538 = vset.pattern.permute.xlu0 0
        %539 = vperm.xlu0 %538, %v535
        %v540 = vpop.permute.xlu0 %539
        %543 = vset.pattern.permute.xlu0 0
        %544 = vperm.xlu0 %543, %v536
        %v545 = vpop.permute.xlu0 %544
        %v549 = vunpack.c.l.b16 %v533
        %v550 = vunpack.c.l.b16 %v534
        %v551 = vpack.c.b16 %v550, %v549
        %v553 = vsel %vm461, %v551, 0
        %555 = vmatpush.bf16.msra.mxu0 0
        %556 = vmatpush.bf16.msra.mxu0 0
        %557 = vmatpush.bf16.msra.mxu0 0
        %558 = vmatpush.bf16.msra.mxu0 0
        %559 = vmatpush.bf16.msra.mxu0 0
        %560 = vmatpush.bf16.msra.mxu0 0
        %561 = vmatpush.bf16.msra.mxu0 0
        %562 = vmatpush.bf16.msra.mxu0 %v529
        %563 = vmatmul.bf16.gmra.mxu0 %v553
        %v564 = vpop.f32.mrf.mxu0
        %v565 = vadd.f32 %v540, %v564
        %v566 = vpop.f32.mrf.mxu0
        %v567 = vadd.f32 %v545, %v566
        %568 = vdwg.mxu0
        %569 = vmatpush.bf16.msra.mxu0 0
        %570 = vmatpush.bf16.msra.mxu0 0
        %571 = vmatpush.bf16.msra.mxu0 0
        %572 = vmatpush.bf16.msra.mxu0 0
        %573 = vmatpush.bf16.msra.mxu0 0
        %574 = vmatpush.bf16.msra.mxu0 0
        %575 = vmatpush.bf16.msra.mxu0 0
        %576 = vmatpush.bf16.msra.mxu0 %v530
        %577 = vmatmul.bf16.gmra.mxu0 %v553
        %v578 = vpop.f32.mrf.mxu0
        %v579 = vadd.f32 %v540, %v578
        %v580 = vpop.f32.mrf.mxu0
        %v581 = vadd.f32 %v545, %v580
        %582 = vdwg.mxu0
        %583 = vmatpush.bf16.msra.mxu0 0
        %584 = vmatpush.bf16.msra.mxu0 0
        %585 = vmatpush.bf16.msra.mxu0 0
        %586 = vmatpush.bf16.msra.mxu0 0
        %587 = vmatpush.bf16.msra.mxu0 0
        %588 = vmatpush.bf16.msra.mxu0 0
        %589 = vmatpush.bf16.msra.mxu0 0
        %590 = vmatpush.bf16.msra.mxu0 %v531
        %591 = vmatmul.bf16.gmra.mxu0 %v553
        %v592 = vpop.f32.mrf.mxu0
        %v593 = vadd.f32 %v540, %v592
        %v594 = vpop.f32.mrf.mxu0
        %v595 = vadd.f32 %v545, %v594
        %596 = vdwg.mxu0
        %597 = vmatpush.bf16.msra.mxu0 0
        %598 = vmatpush.bf16.msra.mxu0 0
        %599 = vmatpush.bf16.msra.mxu0 0
        %600 = vmatpush.bf16.msra.mxu0 0
        %601 = vmatpush.bf16.msra.mxu0 0
        %602 = vmatpush.bf16.msra.mxu0 0
        %603 = vmatpush.bf16.msra.mxu0 0
        %604 = vmatpush.bf16.msra.mxu0 %v532
        %605 = vmatmul.bf16.gmra.mxu0 %v553
        %v606 = vpop.f32.mrf.mxu0
        %v607 = vadd.f32 %v540, %v606
        %v608 = vpop.f32.mrf.mxu0
        %v609 = vadd.f32 %v545, %v608
        %610 = vdwg.mxu0
        %v611 = vmax.f32 %v565, 0.0
        %v612 = vmax.f32 %v579, 0.0
        %v613 = vmax.f32 %v593, 0.0
        %v614 = vmax.f32 %v607, 0.0
        %v615 = vmax.f32 %v567, 0.0
        %v616 = vmax.f32 %v581, 0.0
        %v617 = vmax.f32 %v595, 0.0
        %v618 = vmax.f32 %v609, 0.0
        %v619 = vpack.c.bf16 %v615, %v611
        %v620 = vpack.c.bf16 %v616, %v612
        %v621 = vpack.c.bf16 %v617, %v613
        %v622 = vpack.c.bf16 %v618, %v614
        %v623 = vld [vmem:[%s7] sm:$0x1]
        %v624 = vld [vmem:[%s8] sm:$0x3]
        %626 = vset.pattern.permute.xlu0 0
        %627 = vperm.xlu0 %626, %v624
        %v628 = vpop.permute.xlu0 %627
        %v631 = vsel %vm461, %v623, 0
        %633 = vmatpush.bf16.msra.mxu0 0
        %634 = vmatpush.bf16.msra.mxu0 0
        %635 = vmatpush.bf16.msra.mxu0 0
        %636 = vmatpush.bf16.msra.mxu0 0
        %637 = vmatpush.bf16.msra.mxu0 0
        %638 = vmatpush.bf16.msra.mxu0 0
        %639 = vmatpush.bf16.msra.mxu0 0
        %640 = vmatpush.bf16.msra.mxu0 %v619
        %641 = vmatmul.bf16.gmra.mxu0 %v631
        %v642 = vpop.f32.mrf.mxu0
        %v643 = vadd.f32 %v628, %v642
        %v644 = vpop.f32.mrf.mxu0
        %645 = vdwg.mxu0
        %646 = vmatpush.bf16.msra.mxu0 0
        %647 = vmatpush.bf16.msra.mxu0 0
        %648 = vmatpush.bf16.msra.mxu0 0
        %649 = vmatpush.bf16.msra.mxu0 0
        %650 = vmatpush.bf16.msra.mxu0 0
        %651 = vmatpush.bf16.msra.mxu0 0
        %652 = vmatpush.bf16.msra.mxu0 0
        %653 = vmatpush.bf16.msra.mxu0 %v620
        %654 = vmatmul.bf16.gmra.mxu0 %v631
        %v655 = vpop.f32.mrf.mxu0
        %v656 = vadd.f32 %v628, %v655
        %v657 = vpop.f32.mrf.mxu0
        %658 = vdwg.mxu0
        %659 = vmatpush.bf16.msra.mxu0 0
        %660 = vmatpush.bf16.msra.mxu0 0
        %661 = vmatpush.bf16.msra.mxu0 0
        %662 = vmatpush.bf16.msra.mxu0 0
        %663 = vmatpush.bf16.msra.mxu0 0
        %664 = vmatpush.bf16.msra.mxu0 0
        %665 = vmatpush.bf16.msra.mxu0 0
        %666 = vmatpush.bf16.msra.mxu0 %v621
        %667 = vmatmul.bf16.gmra.mxu0 %v631
        %v668 = vpop.f32.mrf.mxu0
        %v669 = vadd.f32 %v628, %v668
        %v670 = vpop.f32.mrf.mxu0
        %671 = vdwg.mxu0
        %672 = vmatpush.bf16.msra.mxu0 0
        %673 = vmatpush.bf16.msra.mxu0 0
        %674 = vmatpush.bf16.msra.mxu0 0
        %675 = vmatpush.bf16.msra.mxu0 0
        %676 = vmatpush.bf16.msra.mxu0 0
        %677 = vmatpush.bf16.msra.mxu0 0
        %678 = vmatpush.bf16.msra.mxu0 0
        %679 = vmatpush.bf16.msra.mxu0 %v622
        %680 = vmatmul.bf16.gmra.mxu0 %v631
        %v681 = vpop.f32.mrf.mxu0
        %v682 = vadd.f32 %v628, %v681
        %v683 = vpop.f32.mrf.mxu0
        %684 = vdwg.mxu0
        %v689 = vrot.slane %v656, 6
        %v690 = vrot.slane %v669, 4
        %v691 = vrot.slane %v682, 2
        %v692 = vsel %vm365, %v643, %v689
        %vm693 = vcmask 1045508
        %v694 = vsel %vm693, %v690, %v691
        %vm695 = vcmask 1043456
        %v696 = vsel %vm695, %v692, %v694
        %698 = vst [vmem:[%s326] sm:$0xff] %v696
        %s699 = sand.u32 %s225, 1
        %s700 = scalar_lea.sflag [#allocation3], %s699
        %s701 = sand.u32 %s225, 1
        %s702 = smul.addr %s701, 8
        %s703 = scalar_lea.vmem [#allocation2], %s702
        // Predicated region
        $region57: #{tpu_custom_call.1} parent=55 // pred_check
          %p704 = pneg %p235
        $region58: #{tpu_custom_call.1} parent=55 // pred_check_branch
          %706 = sbr.rel (%p704) target = $region60
        $region59: #{tpu_custom_call.1} parent=55 // pred_region
          %s707 = smul.u32 4, %s23
          %709 = vsyncadd %s700, 0
          %s710 = smul.addr %s707, 2
          %s711 = scalar_lea.hbm %s9, %s710
          %s713 = sshll.u32 %s703, 4
          %s714 = int_to_ptr.vmem [resolvable:$true] %s713
          %s715 = sshll.u32 %s711, 4
          %s716 = int_to_ptr.hbm [resolvable:$true] %s715
          %718 = dma.vmem_to_hbm [thread:$0]  %s714, 128, %s716, %s700
        $region60: #{tpu_custom_call.1} parent=55 // pred_fallthru
          _
      $region56: #{tpu_custom_call.1} parent=5 // pred_fallthru
        _
      %p719 = scmp.le.s32.totalorder 2, %s18
      // Predicated region
      $region61: #{tpu_custom_call.1} parent=5 // pred_check
        %p720 = pneg %p719
      $region62: #{tpu_custom_call.1} parent=5 // pred_check_branch
        %722 = sbr.rel (%p720) target = $region64
      $region63: #{tpu_custom_call.1} parent=5 // pred_region
        %s723 = ssub.s32 %s18, 2
        // Predicated region
        $region65: #{tpu_custom_call.1} parent=63 // pred_check
          %p724 = pneg %p241
        $region66: #{tpu_custom_call.1} parent=63 // pred_check_branch
          %726 = sbr.rel (%p724) target = $region68
        $region67: #{tpu_custom_call.1} parent=63 // pred_region
          %s727 = sand.u32 %s226, 1
          %s728 = scalar_lea.sflag [#allocation3], %s727
          %s729 = sand.u32 %s226, 1
          %s730 = smul.addr %s729, 8
          %s731 = scalar_lea.vmem [#allocation2], %s730
          %733 = dma.done %s728, 128
        $region68: #{tpu_custom_call.1} parent=63 // pred_fallthru
          _
      $region64: #{tpu_custom_call.1} parent=5 // pred_fallthru
        _
    $region6: #{tpu_custom_call.1} parent=1 // loop_footer
      %s22 = sadd.s32 1, %s18
    $region7: #{tpu_custom_call.1} parent=1 // loop_footer_branch
      %17 = sbr.rel target = $region3
    $region8: #{tpu_custom_call.1} parent=1 // loop_exit
      _
    %734 = vsyncpa [#allocation3], 1
    %s735 = scalar_lea.sflag [#allocation3], 1
    %736 = vsyncpa %s735, 1

</llo_original>
